<compile_context>
chip_gen: v5e
topology: v5e:2x2
jax: 0.10.0
libtpu: 0.0.40
codegen_flags: <defaults>
</compile_context>

<pallas_src>
import jax
import jax.numpy as jnp
from jax.experimental import pallas as pl
from jax.experimental.pallas import tpu as pltpu


_HALO = 128      # halo block width (lanes); supports kernel sizes up to _HALO + 1
_TL_MAX = 512    # spatial tile width (lanes); measured HBM-roofline sweet spot


def _conv1d_bias_relu_kernel(x_ref, xh_ref, w_ref, b_ref, o_ref):
    # x_ref : (1, Cin, TL)    current spatial tile            (bf16)
    # xh_ref: (1, Cin, HALO)  first HALO cols of the next tile (bf16, zero padded)
    # w_ref : (K, Cout, Cin)  filter taps                     (bf16)
    # b_ref : (Cout, 1)       bias                            (f32)
    # o_ref : (1, Cout, TL)   output tile                     (f32)
    k_size = w_ref.shape[0]
    cout = w_ref.shape[1]
    tl = o_ref.shape[2]

    # Window spanning this tile plus the halo (needed by taps k >= 1 at the edge).
    xw = jnp.concatenate([x_ref[0], xh_ref[0]], axis=1)          # (Cin, TL + HALO)

    # Bias-initialised f32 accumulator; K shifted MXU matmuls (contraction = Cin).
    acc = jnp.broadcast_to(b_ref[...], (cout, tl)).astype(jnp.float32)
    for k in range(k_size):                                      # static tap loop
        acc = acc + jnp.dot(w_ref[k], xw[:, k:k + tl],
                            preferred_element_type=jnp.float32)

    o_ref[0] = jnp.maximum(acc, 0.0).astype(o_ref.dtype)


def conv1d_relu(x_ncl, weight, bias, padding, tl_max=_TL_MAX):
    """relu(conv1d(x) + bias), stride 1.

    x_ncl: (B, Cin, L) f32; weight: (Cout, Cin, K); bias: (Cout,).
    Returns (B, Cout, L_out) with L_out = L + 2*padding - K + 1.
    """
    b, cin, l = x_ncl.shape
    cout, cin_w, k = weight.shape
    assert cin_w == cin
    assert k - 1 <= _HALO, "kernel size too large for halo block"
    l_out = l + 2 * padding - k + 1
    if l_out <= 0:
        raise ValueError("conv1d: kernel does not fit the (padded) input")

    # Spatial tiling: TL is a multiple of 128 (lane-dense output stores).
    tl = int(min(tl_max, pl.cdiv(l_out, 128) * 128))
    t = int(pl.cdiv(l_out, tl))
    l_out_pad = t * tl
    l_x = l_out_pad + _HALO                       # padded input length incl. halo

    # Stay in NCL; zero-pad left by `padding`, right up to l_x; bf16 operands.
    x_pad = jnp.pad(
        x_ncl, ((0, 0), (0, 0), (padding, l_x - l - padding))).astype(jnp.bfloat16)
    w_koi = jnp.transpose(weight, (2, 0, 1)).astype(jnp.bfloat16)   # (K, Cout, Cin)
    b2 = bias.reshape(cout, 1).astype(jnp.float32)

    out_dtype = x_ncl.dtype
    cost = pl.CostEstimate(
        flops=int(2 * b * l_out * k * cin * cout),
        transcendentals=0,
        bytes_accessed=int(x_pad.size * 2 + w_koi.size * 2 + b2.size * 4
                           + b * cout * l_out_pad * jnp.dtype(out_dtype).itemsize),
    )
    # Per-step working set (double-buffered by Pallas); keep an explicit, modest
    # scoped-VMEM limit so the block sizing is valid on v5e/v6e and v7x alike.
    per_step = ((cin * tl + cin * _HALO + k * cout * cin) * 2
                + cout * 4 + cout * tl * 4)
    vmem_limit = int(min(max(8 * per_step + (1 << 20), 4 << 20), 32 << 20))

    out = pl.pallas_call(
        _conv1d_bias_relu_kernel,
        out_shape=jax.ShapeDtypeStruct((b, cout, l_out_pad), out_dtype),
        grid=(b, t),
        in_specs=[
            # current spatial tile
            pl.BlockSpec((1, cin, tl), lambda ib, it: (ib, 0, it)),
            # narrow halo view of the same array: first 128 cols of the next tile
            pl.BlockSpec((1, cin, _HALO),
                         lambda ib, it: (ib, 0, (it + 1) * (tl // _HALO))),
            pl.BlockSpec((k, cout, cin), lambda ib, it: (0, 0, 0)),
            pl.BlockSpec((cout, 1), lambda ib, it: (0, 0)),
        ],
        out_specs=pl.BlockSpec((1, cout, tl), lambda ib, it: (ib, 0, it)),
        compiler_params=pltpu.CompilerParams(
            dimension_semantics=("parallel", "parallel"),
            vmem_limit_bytes=vmem_limit,
        ),
        cost_estimate=cost,
    )(x_pad, x_pad, w_koi, b2)

    if l_out_pad != l_out:
        out = out[:, :, :l_out]
    return out


class Conv1D:
    """JAX/Pallas port of the PyTorch Conv1D module ('naive' and 'group3')."""

    def __init__(self, in_channels, kernel_num, window_size, cnn_method='naive',
                 key=None):
        assert cnn_method in ['naive', 'group3', 'group5']
        self.cnn_method = cnn_method
        self.in_channels = in_channels
        key = jax.random.PRNGKey(0) if key is None else key

        def make_conv(k_init, cout, ksize):
            kw, kb = jax.random.split(k_init)
            bound = 1.0 / float(in_channels * ksize) ** 0.5     # PyTorch default init
            w = jax.random.uniform(kw, (cout, in_channels, ksize),
                                   jnp.float32, -bound, bound)
            bvec = jax.random.uniform(kb, (cout,), jnp.float32, -bound, bound)
            return w, bvec

        if cnn_method == 'naive':
            pad = (window_size - 1) // 2
            w, bvec = make_conv(key, kernel_num, window_size)
            self.convs = [(w, bvec, pad)]                       # for reference checks
            self.fused_w, self.fused_b, self.fused_pad = w, bvec, pad
        elif cnn_method == 'group3':
            assert kernel_num % 3 == 0
            keys = jax.random.split(key, 3)
            self.convs = []
            padded_ws = []
            for sub_key, ksize in zip(keys, (1, 3, 5)):
                w, bvec = make_conv(sub_key, kernel_num // 3, ksize)
                self.convs.append((w, bvec, (ksize - 1) // 2))
                # Zero-pad taps to k=5 (centered): identical math, one fused conv.
                off = (5 - ksize) // 2
                wp = jnp.zeros((kernel_num // 3, in_channels, 5), jnp.float32)
                wp = wp.at[:, :, off:off + ksize].set(w)
                padded_ws.append(wp)
            self.fused_w = jnp.concatenate(padded_ws, axis=0)   # (kernel_num, Cin, 5)
            self.fused_b = jnp.concatenate([bv for (_, bv, _) in self.convs], axis=0)
            self.fused_pad = 2
        else:
            # TODO(synk): 'group5' forward in the reference is not well-formed
            # (undefined self.device, shape-mismatched torch.cat along dim=1);
            # not implemented.
            raise NotImplementedError("group5 reference forward is broken")

    def __call__(self, feature):
        # relu(concat(...)) == concat(relu(...)); group3 is a single fused conv.
        return conv1d_relu(feature, self.fused_w, self.fused_b, self.fused_pad)


def _ref_conv1d_relu(x, w, b, pad):
    out = jax.lax.conv_general_dilated(
        x, w, window_strides=(1,), padding=[(pad, pad)],
        dimension_numbers=('NCH', 'OIH', 'NCH'))
    return jnp.maximum(out + b[None, :, None], 0.0)


if __name__ == "__main__":
    key = jax.random.PRNGKey(0)
    k_x, k_naive, k_g3, k_xl, k_long = jax.random.split(key, 5)

    B, Cin, L = 2, 4, 16
    kernel_num, window_size = 6, 3
    x = jax.random.normal(k_x, (B, Cin, L), dtype=jnp.float32)

    # naive: Conv1d(Cin -> kernel_num, k=3, pad=1) + ReLU
    mod_naive = Conv1D(Cin, kernel_num, window_size, 'naive', key=k_naive)
    out_naive = jax.block_until_ready(mod_naive(x))
    ref_naive = jnp.concatenate(
        [_ref_conv1d_relu(x, w, b, p) for (w, b, p) in mod_naive.convs], axis=1)
    assert out_naive.shape == (B, kernel_num, L), out_naive.shape
    assert jnp.allclose(out_naive, ref_naive, atol=5e-2, rtol=5e-2)

    # group3: concat of three convs (k=1,3,5) fused into one kernel call
    mod_g3 = Conv1D(Cin, kernel_num, window_size, 'group3', key=k_g3)
    out_g3 = jax.block_until_ready(mod_g3(x))
    ref_g3 = jnp.concatenate(
        [_ref_conv1d_relu(x, w, b, p) for (w, b, p) in mod_g3.convs], axis=1)
    assert out_g3.shape == (B, kernel_num, L), out_g3.shape
    assert jnp.allclose(out_g3, ref_g3, atol=5e-2, rtol=5e-2)

    # longer sequence: exercises multi-tile grid, halo crossing and edge slicing
    L_long = 700
    x_long = jax.random.normal(k_xl, (B, Cin, L_long), dtype=jnp.float32)
    mod_long = Conv1D(Cin, kernel_num, 5, 'naive', key=k_long)
    out_long = jax.block_until_ready(mod_long(x_long))
    ref_long = jnp.concatenate(
        [_ref_conv1d_relu(x_long, w, b, p) for (w, b, p) in mod_long.convs], axis=1)
    assert out_long.shape == (B, kernel_num, L_long), out_long.shape
    assert jnp.allclose(out_long, ref_long, atol=5e-2, rtol=5e-2)

    print("KERNEL_OK")
</pallas_src>

<mosaic_0001>
module attributes {stable_mosaic.version = 11 : i64} {
  func.func @_conv1d_bias_relu_kernel(%arg0: i32, %arg1: i32, %arg2: memref<1x4x128xbf16, #tpu.memory_space<vmem>>, %arg3: memref<1x4x128xbf16, #tpu.memory_space<vmem>>, %arg4: memref<3x6x4xbf16, #tpu.memory_space<vmem>>, %arg5: memref<6x1xf32, #tpu.memory_space<vmem>>, %arg6: memref<1x6x128xf32, #tpu.memory_space<vmem>>) attributes {dimension_semantics = [#tpu.dimension_semantics<parallel>, #tpu.dimension_semantics<parallel>], iteration_bounds = array<i64: 2, 1>, scalar_prefetch = 0 : i64, scratch_operands = 0 : i64, tpu.core_type = #tpu.core_type<tc>, window_params = [{transform_indices = @transform_0, window_bounds = array<i64: 1, 4, 128>}, {transform_indices = @transform_1, window_bounds = array<i64: 1, 4, 128>}, {pipeline_mode = #tpu.pipeline_mode<synchronous>, transform_indices = @transform_2, window_bounds = array<i64: 3, 6, 4>}, {pipeline_mode = #tpu.pipeline_mode<synchronous>, transform_indices = @transform_3, window_bounds = array<i64: 6, 1>}, {transform_indices = @transform_4, window_bounds = array<i64: 1, 6, 128>}]} {
    %c0 = arith.constant 0 : index
    %c0_0 = arith.constant 0 : index
    %c0_1 = arith.constant 0 : index
    %0 = vector.load %arg2[%c0, %c0_0, %c0_1] : memref<1x4x128xbf16, #tpu.memory_space<vmem>>, vector<1x4x128xbf16>
    %1 = vector.shape_cast %0 : vector<1x4x128xbf16> to vector<4x128xbf16>
    %c0_2 = arith.constant 0 : index
    %c0_3 = arith.constant 0 : index
    %c0_4 = arith.constant 0 : index
    %2 = vector.load %arg3[%c0_2, %c0_3, %c0_4] : memref<1x4x128xbf16, #tpu.memory_space<vmem>>, vector<1x4x128xbf16>
    %3 = vector.shape_cast %2 : vector<1x4x128xbf16> to vector<4x128xbf16>
    %4 = tpu.concatenate %1, %3 in 1 : vector<4x128xbf16>, vector<4x128xbf16> -> vector<4x256xbf16>
    %c0_5 = arith.constant 0 : index
    %c0_6 = arith.constant 0 : index
    %5 = vector.load %arg5[%c0_5, %c0_6] : memref<6x1xf32, #tpu.memory_space<vmem>>, vector<6x1xf32>
    %6 = vector.shape_cast %5 : vector<6x1xf32> to vector<6x1xf32>
    %7 = vector.broadcast %6 : vector<6x1xf32> to vector<6x128xf32>
    %c0_7 = arith.constant 0 : index
    %c0_8 = arith.constant 0 : index
    %c0_9 = arith.constant 0 : index
    %8 = vector.load %arg4[%c0_7, %c0_8, %c0_9] : memref<3x6x4xbf16, #tpu.memory_space<vmem>>, vector<1x6x4xbf16>
    %9 = vector.shape_cast %8 : vector<1x6x4xbf16> to vector<6x4xbf16>
    %10 = vector.extract_strided_slice %4 {offsets = [0, 0], sizes = [4, 128], strides = [1, 1]} : vector<4x256xbf16> to vector<4x128xbf16>
    %cst = arith.constant dense<0.000000e+00> : vector<6x128xf32>
    %11 = tpu.matmul %9, %10, %cst {dimension_numbers = #tpu.dot_dimension_numbers<[1], [0], [0], [1], [0, 0, 1, 1], [], []>} : vector<6x4xbf16>, vector<4x128xbf16>, vector<6x128xf32> -> vector<6x128xf32>
    %12 = arith.addf %7, %11 : vector<6x128xf32>
    %c1 = arith.constant 1 : index
    %c0_10 = arith.constant 0 : index
    %c0_11 = arith.constant 0 : index
    %13 = vector.load %arg4[%c1, %c0_10, %c0_11] : memref<3x6x4xbf16, #tpu.memory_space<vmem>>, vector<1x6x4xbf16>
    %14 = vector.shape_cast %13 : vector<1x6x4xbf16> to vector<6x4xbf16>
    %15 = vector.extract_strided_slice %4 {offsets = [0, 1], sizes = [4, 128], strides = [1, 1]} : vector<4x256xbf16> to vector<4x128xbf16>
    %cst_12 = arith.constant dense<0.000000e+00> : vector<6x128xf32>
    %16 = tpu.matmul %14, %15, %cst_12 {dimension_numbers = #tpu.dot_dimension_numbers<[1], [0], [0], [1], [0, 0, 1, 1], [], []>} : vector<6x4xbf16>, vector<4x128xbf16>, vector<6x128xf32> -> vector<6x128xf32>
    %17 = arith.addf %12, %16 : vector<6x128xf32>
    %c2 = arith.constant 2 : index
    %c0_13 = arith.constant 0 : index
    %c0_14 = arith.constant 0 : index
    %18 = vector.load %arg4[%c2, %c0_13, %c0_14] : memref<3x6x4xbf16, #tpu.memory_space<vmem>>, vector<1x6x4xbf16>
    %19 = vector.shape_cast %18 : vector<1x6x4xbf16> to vector<6x4xbf16>
    %20 = vector.extract_strided_slice %4 {offsets = [0, 2], sizes = [4, 128], strides = [1, 1]} : vector<4x256xbf16> to vector<4x128xbf16>
    %cst_15 = arith.constant dense<0.000000e+00> : vector<6x128xf32>
    %21 = tpu.matmul %19, %20, %cst_15 {dimension_numbers = #tpu.dot_dimension_numbers<[1], [0], [0], [1], [0, 0, 1, 1], [], []>} : vector<6x4xbf16>, vector<4x128xbf16>, vector<6x128xf32> -> vector<6x128xf32>
    %22 = arith.addf %17, %21 : vector<6x128xf32>
    %cst_16 = arith.constant 0.000000e+00 : f32
    %23 = vector.broadcast %cst_16 : f32 to vector<6x128xf32>
    %24 = arith.maximumf %22, %23 : vector<6x128xf32>
    %c0_17 = arith.constant 0 : index
    %c0_18 = arith.constant 0 : index
    %c0_19 = arith.constant 0 : index
    %25 = vector.load %arg6[%c0_17, %c0_18, %c0_19] : memref<1x6x128xf32, #tpu.memory_space<vmem>>, vector<1x6x128xf32>
    %26 = vector.shape_cast %25 : vector<1x6x128xf32> to vector<6x128xf32>
    %27 = vector.shape_cast %24 : vector<6x128xf32> to vector<1x6x128xf32>
    tpu.vector_store %arg6[%c0_17, %c0_18, %c0_19], %27 {strides = array<i32>} : memref<1x6x128xf32, #tpu.memory_space<vmem>>, vector<1x6x128xf32>,
    return
  }
  func.func @transform_0(%arg0: i32, %arg1: i32) -> (i32, i32, i32) {
    %c0_i32 = arith.constant 0 : i32
    %c0_i32_0 = arith.constant 0 : i32
    return %arg0, %c0_i32, %arg1 : i32, i32, i32
  }
  func.func @transform_1(%arg0: i32, %arg1: i32) -> (i32, i32, i32) {
    %c1_i32 = arith.constant 1 : i32
    %0 = arith.addi %arg1, %c1_i32 : i32
    %c1_i32_0 = arith.constant 1 : i32
    %1 = arith.muli %0, %c1_i32_0 : i32
    %c0_i32 = arith.constant 0 : i32
    %c0_i32_1 = arith.constant 0 : i32
    return %arg0, %c0_i32, %1 : i32, i32, i32
  }
  func.func @transform_2(%arg0: i32, %arg1: i32) -> (i32, i32, i32) {
    %c0_i32 = arith.constant 0 : i32
    %c0_i32_0 = arith.constant 0 : i32
    %c0_i32_1 = arith.constant 0 : i32
    %c0_i32_2 = arith.constant 0 : i32
    return %c0_i32, %c0_i32_0, %c0_i32_1 : i32, i32, i32
  }
  func.func @transform_3(%arg0: i32, %arg1: i32) -> (i32, i32) {
    %c0_i32 = arith.constant 0 : i32
    %c0_i32_0 = arith.constant 0 : i32
    %c0_i32_1 = arith.constant 0 : i32
    return %c0_i32, %c0_i32_0 : i32, i32
  }
  func.func @transform_4(%arg0: i32, %arg1: i32) -> (i32, i32, i32) {
    %c0_i32 = arith.constant 0 : i32
    %c0_i32_0 = arith.constant 0 : i32
    return %arg0, %c0_i32, %arg1 : i32, i32, i32
  }
}

</mosaic_0001>

<llo_original>
// kernel: tpu_custom_call.1
$region0: #{tpu_custom_call.1}
  #allocation0 [shape = 'u32[]', space=smem, size = 0x4, offset = 0x4, fixed_abs, tag = 'smem constant byte address 0x4 - core index']
  #allocation1 [shape = 'u32[72,128]{1,0:T(1,128)}', space=vmem, size = 0x9000, scoped, tag = 'internal scratch']
  %s0 = inlined_call_operand.vmem [shape: bf16[2,4,256], index: 0, kind: input, shape index: {}]
  %s1 = inlined_call_operand.vmem [shape: bf16[2,4,256], index: 1, kind: input, shape index: {}]
  %s2 = inlined_call_operand.vmem [shape: bf16[3,6,4], index: 2, kind: input, shape index: {}]
  %s3 = inlined_call_operand.vmem [shape: f32[6,1], index: 3, kind: input, shape index: {}]
  %s4 = inlined_call_operand.vmem [shape: f32[2,6,128], index: 4, kind: output, shape index: {}]
  %s5 = sld [smem:[#allocation0]]
  $region49: #{tpu_custom_call.1} parent=0
    _
  %s7 = ssub.s32 1, %s5
  %s8 = scalar_select 0, %s7, %s5
  loop: start=0, step=1, limit=4
  $region2: #{tpu_custom_call.1} parent=0 // loop_pre_header
    _
  $region3: #{tpu_custom_call.1} parent=0 // loop_header
    %s10 = sphi 0, %s14
    %p11 = scmp.ge.s32.totalorder %s10, 4
    %s17 = sphi 0, %s29
    %s18 = sphi 0, %s25
    %s19 = sphi 0, %s17
    %s20 = sphi 0, %s18
    %s21 = sphi 0, %s19
    %s22 = sphi 0, %s20
    %s34 = sphi 0, %s36
    %s37 = sphi 0, %s34
    %s38 = sphi 0, %s37
    %s54 = sphi 0, %s38
    %s64 = sphi 0, %s66
    %s67 = sphi 0, %s64
    %s68 = sphi 0, %s67
    %s84 = sphi 0, %s68
    %s88 = sphi 0, %s88
    %s90 = sphi 0, %s88
    %s91 = sphi 0, %s90
    %s105 = sphi 0, %s91
    %s109 = sphi 0, %s109
    %s111 = sphi 0, %s109
    %s112 = sphi 0, %s111
    %s126 = sphi 0, %s112
    %s134 = sphi 0, %s136
    %s137 = sphi 0, %s134
    %s138 = sphi 0, %s137
    %s154 = sphi 0, %s138
  $region4: #{tpu_custom_call.1} parent=0 // loop_header_branch
    %13 = sbr.rel (%p11) target = $region8
  $region5: #{tpu_custom_call.1} parent=0 // loop_body
    %s15 = ssub.s32 %s10, 1
    %s16 = ssub.s32 %s10, 2
    %s23 = sadd.s32 1, %s18
    %p24 = scmp.ge.s32.totalorder %s23, 1
    %s25 = scalar_select %p24, 0, %s23
    %s26 = sadd.s32 1, %s17
    %s27 = scalar_select %p24, %s26, %s17
    %p28 = scmp.ge.s32.totalorder %s27, 2
    %s29 = scalar_select %p28, 0, %s27
    %s30 = ssub.s32 %s17, %s29
    %s31 = ssub.s32 %s18, %s25
    %s32 = sor.u32 %s30, %s31
    %p33 = scmp.eq.s32.totalorder %s32, 0
    %s35 = sadd.s32 %s34, 1
    %s36 = scalar_select %p33, %s34, %s35
    %p39 = pneg %p33
    %p40 = scmp.eq.s32.totalorder %s10, 1
    %p41 = por %p39, %p40
    %p42 = scmp.ne.s32.totalorder %s34, %s37
    %p43 = scmp.eq.s32.totalorder %s10, 0
    %p44 = por %p42, %p43
    %p45 = scmp.ne.s32.totalorder %s34, %s37
    %p46 = scmp.eq.s32.totalorder %s15, 1
    %p47 = por %p45, %p46
    %p48 = scmp.ne.s32.totalorder %s37, %s38
    %p49 = scmp.eq.s32.totalorder %s15, 0
    %p50 = por %p48, %p49
    %p51 = scmp.ne.s32.totalorder %s37, %s38
    %p52 = scmp.eq.s32.totalorder %s16, 1
    %p53 = por %p51, %p52
    %p55 = scmp.ne.s32.totalorder %s38, %s54
    %p56 = scmp.eq.s32.totalorder %s16, 0
    %p57 = por %p55, %p56
    %s58 = sadd.s32 %s18, 1
    %s59 = sadd.s32 %s25, 1
    %s60 = ssub.s32 %s17, %s29
    %s61 = ssub.s32 %s58, %s59
    %s62 = sor.u32 %s60, %s61
    %p63 = scmp.eq.s32.totalorder %s62, 0
    %s65 = sadd.s32 %s64, 1
    %s66 = scalar_select %p63, %s64, %s65
    %p69 = pneg %p63
    %p70 = scmp.eq.s32.totalorder %s10, 1
    %p71 = por %p69, %p70
    %p72 = scmp.ne.s32.totalorder %s64, %s67
    %p73 = scmp.eq.s32.totalorder %s10, 0
    %p74 = por %p72, %p73
    %p75 = scmp.ne.s32.totalorder %s64, %s67
    %p76 = scmp.eq.s32.totalorder %s15, 1
    %p77 = por %p75, %p76
    %p78 = scmp.ne.s32.totalorder %s67, %s68
    %p79 = scmp.eq.s32.totalorder %s15, 0
    %p80 = por %p78, %p79
    %p81 = scmp.ne.s32.totalorder %s67, %s68
    %p82 = scmp.eq.s32.totalorder %s16, 1
    %p83 = por %p81, %p82
    %p85 = scmp.ne.s32.totalorder %s68, %s84
    %p86 = scmp.eq.s32.totalorder %s16, 0
    %p87 = por %p85, %p86
    %s89 = sadd.s32 %s88, 1
    %p92 = scmp.eq.s32.totalorder %s10, 1
    %p93 = scmp.ne.s32.totalorder %s88, %s90
    %p94 = scmp.eq.s32.totalorder %s10, 0
    %p95 = por %p93, %p94
    %p96 = scmp.ne.s32.totalorder %s88, %s90
    %p97 = scmp.eq.s32.totalorder %s15, 1
    %p98 = por %p96, %p97
    %p99 = scmp.ne.s32.totalorder %s90, %s91
    %p100 = scmp.eq.s32.totalorder %s15, 0
    %p101 = por %p99, %p100
    %p102 = scmp.ne.s32.totalorder %s90, %s91
    %p103 = scmp.eq.s32.totalorder %s16, 1
    %p104 = por %p102, %p103
    %p106 = scmp.ne.s32.totalorder %s91, %s105
    %p107 = scmp.eq.s32.totalorder %s16, 0
    %p108 = por %p106, %p107
    %s110 = sadd.s32 %s109, 1
    %p113 = scmp.eq.s32.totalorder %s10, 1
    %p114 = scmp.ne.s32.totalorder %s109, %s111
    %p115 = scmp.eq.s32.totalorder %s10, 0
    %p116 = por %p114, %p115
    %p117 = scmp.ne.s32.totalorder %s109, %s111
    %p118 = scmp.eq.s32.totalorder %s15, 1
    %p119 = por %p117, %p118
    %p120 = scmp.ne.s32.totalorder %s111, %s112
    %p121 = scmp.eq.s32.totalorder %s15, 0
    %p122 = por %p120, %p121
    %p123 = scmp.ne.s32.totalorder %s111, %s112
    %p124 = scmp.eq.s32.totalorder %s16, 1
    %p125 = por %p123, %p124
    %p127 = scmp.ne.s32.totalorder %s112, %s126
    %p128 = scmp.eq.s32.totalorder %s16, 0
    %p129 = por %p127, %p128
    %s130 = ssub.s32 %s17, %s29
    %s131 = ssub.s32 %s18, %s25
    %s132 = sor.u32 %s130, %s131
    %p133 = scmp.eq.s32.totalorder %s132, 0
    %s135 = sadd.s32 %s134, 1
    %s136 = scalar_select %p133, %s134, %s135
    %p139 = pneg %p133
    %p140 = scmp.eq.s32.totalorder %s10, 1
    %p141 = por %p139, %p140
    %p142 = scmp.ne.s32.totalorder %s134, %s137
    %p143 = scmp.eq.s32.totalorder %s10, 0
    %p144 = por %p142, %p143
    %p145 = scmp.ne.s32.totalorder %s134, %s137
    %p146 = scmp.eq.s32.totalorder %s15, 1
    %p147 = por %p145, %p146
    %p148 = scmp.ne.s32.totalorder %s137, %s138
    %p149 = scmp.eq.s32.totalorder %s15, 0
    %p150 = por %p148, %p149
    %p151 = scmp.ne.s32.totalorder %s137, %s138
    %p152 = scmp.eq.s32.totalorder %s16, 1
    %p153 = por %p151, %p152
    %p155 = scmp.ne.s32.totalorder %s138, %s154
    %p156 = scmp.eq.s32.totalorder %s16, 0
    %p157 = por %p155, %p156
    %p158 = scmp.le.s32.totalorder 1, %s10
    %p159 = scmp.lt.s32.totalorder %s10, 3
    %p160 = pnand %p158, %p159
    %p161 = pneg %p160
    // Predicated region
    $region9: #{tpu_custom_call.1} parent=5 // pred_check
      _
    $region10: #{tpu_custom_call.1} parent=5 // pred_check_branch
      %163 = sbr.rel (%p160) target = $region12
    $region11: #{tpu_custom_call.1} parent=5 // pred_region
      %s164 = ssub.s32 %s10, 1
      // Predicated region
      $region13: #{tpu_custom_call.1} parent=11 // pred_check
        %p165 = pneg %p101
      $region14: #{tpu_custom_call.1} parent=11 // pred_check_branch
        %167 = sbr.rel (%p165) target = $region16
      $region15: #{tpu_custom_call.1} parent=11 // pred_region
        _
      $region16: #{tpu_custom_call.1} parent=11 // pred_fallthru
        _
      // Predicated region
      $region17: #{tpu_custom_call.1} parent=11 // pred_check
        %p168 = pneg %p122
      $region18: #{tpu_custom_call.1} parent=11 // pred_check_branch
        %170 = sbr.rel (%p168) target = $region20
      $region19: #{tpu_custom_call.1} parent=11 // pred_region
        _
      $region20: #{tpu_custom_call.1} parent=11 // pred_fallthru
        _
    $region12: #{tpu_custom_call.1} parent=5 // pred_fallthru
      _
    %p171 = scmp.lt.s32.totalorder %s10, 2
    // Predicated region
    $region21: #{tpu_custom_call.1} parent=5 // pred_check
      %p172 = pneg %p171
    $region22: #{tpu_custom_call.1} parent=5 // pred_check_branch
      %174 = sbr.rel (%p172) target = $region24
    $region23: #{tpu_custom_call.1} parent=5 // pred_region
      // Predicated region
      $region25: #{tpu_custom_call.1} parent=23 // pred_check
        %p175 = pneg %p44
      $region26: #{tpu_custom_call.1} parent=23 // pred_check_branch
        %177 = sbr.rel (%p175) target = $region28
      $region27: #{tpu_custom_call.1} parent=23 // pred_region
        %p178 = scmp.lt.s32.totalorder %s17, 1
        %s179 = scalar_select %p178, %s17, 1
        %p180 = scmp.lt.s32.totalorder %s18, 1
        %s181 = scalar_select %p180, %s18, 1
        %s182 = smul.addr %s179, 2
        %s183 = sadd.s32 %s181, %s182
        %s184 = smul.addr %s183, 2
        %s185 = scalar_lea.vmem %s0, %s184
      $region28: #{tpu_custom_call.1} parent=23 // pred_fallthru
        _
      // Predicated region
      $region29: #{tpu_custom_call.1} parent=23 // pred_check
        %p186 = pneg %p74
      $region30: #{tpu_custom_call.1} parent=23 // pred_check_branch
        %188 = sbr.rel (%p186) target = $region32
      $region31: #{tpu_custom_call.1} parent=23 // pred_region
        %s189 = sadd.s32 %s18, 1
        %p190 = scmp.lt.s32.totalorder %s17, 1
        %s191 = scalar_select %p190, %s17, 1
        %p192 = scmp.lt.s32.totalorder %s189, 1
        %s193 = scalar_select %p192, %s189, 1
        %s194 = smul.addr %s191, 2
        %s195 = sadd.s32 %s193, %s194
        %s196 = smul.addr %s195, 2
        %s197 = scalar_lea.vmem %s1, %s196
        %s198 = sadd.s32 %s18, 1
      $region32: #{tpu_custom_call.1} parent=23 // pred_fallthru
        _
    $region24: #{tpu_custom_call.1} parent=5 // pred_fallthru
      _
    %p199 = scmp.le.s32.totalorder 1, %s10
    %p200 = scmp.lt.s32.totalorder %s10, 3
    %p201 = pnand %p199, %p200
    %p202 = pneg %p201
    // Predicated region
    $region33: #{tpu_custom_call.1} parent=5 // pred_check
      _
    $region34: #{tpu_custom_call.1} parent=5 // pred_check_branch
      %204 = sbr.rel (%p201) target = $region36
    $region35: #{tpu_custom_call.1} parent=5 // pred_region
      %s205 = ssub.s32 %s10, 1
      %p206 = scmp.lt.s32.totalorder %s19, 1
      %s207 = scalar_select %p206, %s19, 1
      %p208 = scmp.lt.s32.totalorder %s20, 1
      %s209 = scalar_select %p208, %s20, 1
      %s210 = smul.addr %s207, 2
      %s211 = sadd.s32 %s209, %s210
      %s212 = smul.addr %s211, 2
      %s213 = scalar_lea.vmem %s0, %s212
      %p214 = pneg %p50
      %p215 = pneg %p47
      %s216 = sadd.s32 %s20, 1
      %p217 = scmp.lt.s32.totalorder %s19, 1
      %s218 = scalar_select %p217, %s19, 1
      %p219 = scmp.lt.s32.totalorder %s216, 1
      %s220 = scalar_select %p219, %s216, 1
      %s221 = smul.addr %s218, 2
      %s222 = sadd.s32 %s220, %s221
      %s223 = smul.addr %s222, 2
      %s224 = scalar_lea.vmem %s1, %s223
      %p225 = pneg %p80
      %p226 = pneg %p77
      %p227 = pneg %p101
      %p228 = pneg %p98
      %p229 = pneg %p122
      %p230 = pneg %p119
      %p231 = pneg %p150
      %p232 = pneg %p147
      %p233 = scmp.lt.s32.totalorder %s19, 1
      %s234 = scalar_select %p233, %s19, 1
      %p235 = scmp.lt.s32.totalorder %s20, 0
      %s236 = scalar_select %p235, %s20, 0
      %s237 = sadd.s32 %s236, %s234
      %s238 = smul.addr %s237, 8
      %s239 = scalar_lea.vmem %s4, %s238
      %p240 = scmp.lt.s32.totalorder %s19, 1
      %s241 = scalar_select %p240, %s19, 1
      %p242 = scmp.lt.s32.totalorder %s20, 1
      %s243 = scalar_select %p242, %s20, 1
      %s244 = smul.addr %s241, 2
      %s245 = sadd.s32 %s243, %s244
      %s246 = smul.addr %s245, 2
      %s247 = scalar_lea.vmem %s0, %s246
      %s248 = sadd.s32 %s20, 1
      %p249 = scmp.lt.s32.totalorder %s19, 1
      %s250 = scalar_select %p249, %s19, 1
      %p251 = scmp.lt.s32.totalorder %s248, 1
      %s252 = scalar_select %p251, %s248, 1
      %s253 = smul.addr %s250, 2
      %s254 = sadd.s32 %s252, %s253
      %s255 = smul.addr %s254, 2
      %s256 = scalar_lea.vmem %s1, %s255
      %s257 = sadd.s32 %s20, 1
      %p258 = scmp.lt.s32.totalorder %s19, 1
      %s259 = scalar_select %p258, %s19, 1
      %p260 = scmp.lt.s32.totalorder %s20, 0
      %s261 = scalar_select %p260, %s20, 0
      %s262 = sadd.s32 %s261, %s259
      %s263 = smul.addr %s262, 8
      %s264 = scalar_lea.vmem %s4, %s263
      %v266 = vld [vmem:[%s247] sm:$0x3]
      %v267 = vld [vmem:[%s256] sm:$0x3]
      %v268 = vld [vmem:[%s3] sm:$0x3f]
      %270 = vset.pattern.permute.xlu0 0
      %271 = vperm.xlu0 %270, %v268
      %v272 = vpop.permute.xlu0 %271
      %v274 = vld [vmem:[%s2] sm:$0x7]
      %vm275 = vcmask 31744
      %v277 = vsel %vm275, %v274, 0
      %vm279 = vcmask 1041408
      %v281 = vsel %vm279, %v266, 0
      %283 = vmatpush.bf16.msra.mxu0 0
      %284 = vmatpush.bf16.msra.mxu0 0
      %285 = vmatpush.bf16.msra.mxu0 0
      %286 = vmatpush.bf16.msra.mxu0 0
      %287 = vmatpush.bf16.msra.mxu0 0
      %288 = vmatpush.bf16.msra.mxu0 0
      %289 = vmatpush.bf16.msra.mxu0 0
      %290 = vmatpush.bf16.msra.mxu0 %v281
      %291 = vmatmul.bf16.gmra.mxu0 %v277
      %v292 = vpop.f32.mrf.mxu0
      %v293 = vadd.f32 0.0, %v292
      %v294 = vpop.f32.mrf.mxu0
      %295 = vdwg.mxu0
      %v296 = vadd.f32 %v272, %v293
      %s297 = scalar_lea.vmem %s2, 4
      %v298 = vld [vmem:[%s297] sm:$0x7]
      %301 = vrot.lane.b32.xlu0 %v266, 127
      %v302 = vpop.permute.xlu0 %301
      %303 = vrot.lane.b32.xlu0 %v267, 127
      %v304 = vpop.permute.xlu0 %303
      %vm305 = vcmask 1039360
      %v306 = vsel %vm305, %v302, %v304
      %v308 = vsel %vm275, %v298, 0
      %v311 = vsel %vm279, %v306, 0
      %313 = vmatpush.bf16.msra.mxu0 0
      %314 = vmatpush.bf16.msra.mxu0 0
      %315 = vmatpush.bf16.msra.mxu0 0
      %316 = vmatpush.bf16.msra.mxu0 0
      %317 = vmatpush.bf16.msra.mxu0 0
      %318 = vmatpush.bf16.msra.mxu0 0
      %319 = vmatpush.bf16.msra.mxu0 0
      %320 = vmatpush.bf16.msra.mxu0 %v311
      %321 = vmatmul.bf16.gmra.mxu0 %v308
      %v322 = vpop.f32.mrf.mxu0
      %v323 = vadd.f32 0.0, %v322
      %v324 = vpop.f32.mrf.mxu0
      %325 = vdwg.mxu0
      %v326 = vadd.f32 %v296, %v323
      %s327 = scalar_lea.vmem %s2, 8
      %v328 = vld [vmem:[%s327] sm:$0x7]
      %329 = vrot.lane.b32.xlu0 %v266, 126
      %v330 = vpop.permute.xlu0 %329
      %331 = vrot.lane.b32.xlu0 %v267, 126
      %v332 = vpop.permute.xlu0 %331
      %vm333 = vcmask 1031168
      %v334 = vsel %vm333, %v330, %v332
      %v336 = vsel %vm275, %v328, 0
      %v339 = vsel %vm279, %v334, 0
      %341 = vmatpush.bf16.msra.mxu0 0
      %342 = vmatpush.bf16.msra.mxu0 0
      %343 = vmatpush.bf16.msra.mxu0 0
      %344 = vmatpush.bf16.msra.mxu0 0
      %345 = vmatpush.bf16.msra.mxu0 0
      %346 = vmatpush.bf16.msra.mxu0 0
      %347 = vmatpush.bf16.msra.mxu0 0
      %348 = vmatpush.bf16.msra.mxu0 %v339
      %349 = vmatmul.bf16.gmra.mxu0 %v336
      %v350 = vpop.f32.mrf.mxu0
      %v351 = vadd.f32 0.0, %v350
      %v352 = vpop.f32.mrf.mxu0
      %353 = vdwg.mxu0
      %v354 = vadd.f32 %v326, %v351
      %v355 = vmax.f32 %v354, 0.0
      %356 = vst [vmem:[%s264] sm:$0x3f] %v355
      %p357 = scmp.lt.s32.totalorder %s19, 1
      %s358 = scalar_select %p357, %s19, 1
      %p359 = scmp.lt.s32.totalorder %s20, 0
      %s360 = scalar_select %p359, %s20, 0
      %s361 = sadd.s32 %s360, %s358
      %s362 = smul.addr %s361, 8
      %s363 = scalar_lea.vmem %s4, %s362
      // Predicated region
      $region37: #{tpu_custom_call.1} parent=35 // pred_check
        %p364 = pneg %p147
      $region38: #{tpu_custom_call.1} parent=35 // pred_check_branch
        %366 = sbr.rel (%p364) target = $region40
      $region39: #{tpu_custom_call.1} parent=35 // pred_region
        _
      $region40: #{tpu_custom_call.1} parent=35 // pred_fallthru
        _
    $region36: #{tpu_custom_call.1} parent=5 // pred_fallthru
      _
    %p367 = scmp.le.s32.totalorder 2, %s10
    // Predicated region
    $region41: #{tpu_custom_call.1} parent=5 // pred_check
      %p368 = pneg %p367
    $region42: #{tpu_custom_call.1} parent=5 // pred_check_branch
      %370 = sbr.rel (%p368) target = $region44
    $region43: #{tpu_custom_call.1} parent=5 // pred_region
      %s371 = ssub.s32 %s10, 2
      // Predicated region
      $region45: #{tpu_custom_call.1} parent=43 // pred_check
        %p372 = pneg %p153
      $region46: #{tpu_custom_call.1} parent=43 // pred_check_branch
        %374 = sbr.rel (%p372) target = $region48
      $region47: #{tpu_custom_call.1} parent=43 // pred_region
        %p375 = scmp.lt.s32.totalorder %s21, 1
        %s376 = scalar_select %p375, %s21, 1
        %p377 = scmp.lt.s32.totalorder %s22, 0
        %s378 = scalar_select %p377, %s22, 0
        %s379 = sadd.s32 %s378, %s376
        %s380 = smul.addr %s379, 8
        %s381 = scalar_lea.vmem %s4, %s380
      $region48: #{tpu_custom_call.1} parent=43 // pred_fallthru
        _
    $region44: #{tpu_custom_call.1} parent=5 // pred_fallthru
      _
  $region6: #{tpu_custom_call.1} parent=0 // loop_footer
    %s14 = sadd.s32 1, %s10
  $region7: #{tpu_custom_call.1} parent=0 // loop_footer_branch
    %9 = sbr.rel target = $region3
  $region8: #{tpu_custom_call.1} parent=0 // loop_exit
    _

</llo_original>
